<compile_context>
chip_gen: v5e
topology: v5e:2x2
jax: 0.10.0
libtpu: 0.0.40
codegen_flags: <defaults>
</compile_context>

<pallas_src>
import functools

import jax
import jax.numpy as jnp
from jax.experimental import pallas as pl
from jax.experimental.pallas import tpu as pltpu


def _softmax_l1_partial_kernel(x_ref, t_ref, o_ref, *, tb, batch, n, diff_dtype):
    i = pl.program_id(0)

    # Numerically-stable softmax along the lane (class) axis, f32, exact div.
    x = x_ref[...].astype(jnp.float32)
    m = jnp.max(x, axis=-1, keepdims=True)
    e = jnp.exp(x - m)
    p = e / jnp.sum(e, axis=-1, keepdims=True)

    t = t_ref[...]
    if diff_dtype == jnp.float32:
        diff = jnp.abs(p - t.astype(jnp.float32))
    else:
        # bf16 inputs: keep the elementwise diff + partial-sum adds packed
        # (2 elems / lane on v6e/v7x VPU); softmax above stays f32.
        diff = jnp.abs(p.astype(diff_dtype) - t.astype(diff_dtype))

    def store(d):
        # vreg-aligned partial reduction (pure VALU adds): (tb, n) -> (8, n)
        o_ref[...] = d.reshape(tb // 8, 8, n).sum(axis=0).astype(jnp.float32)

    if batch % tb != 0:  # static: only the very last block can be ragged
        last = pl.num_programs(0) - 1

        @pl.when(i == last)
        def _():
            row = jax.lax.broadcasted_iota(jnp.int32, (tb, 1), 0) + i * tb
            # Post-diff mask is required for correctness: rows >= batch hold
            # unspecified data; any NaN/Inf they produce is row-local and is
            # selected away here before the cross-row sum.
            store(jnp.where(row < batch, diff, 0.0))

        @pl.when(i != last)
        def _():
            store(diff)
    else:
        store(diff)


def softmax_l1_loss(x, target, *, tb=None, vmem_budget_bytes=32 << 20,
                    min_blocks=2):
    """Scalar mean(|softmax(x, axis=-1) - target|) == PyTorch SoftmaxL1Loss.

    Accepts f32 or bf16 inputs directly (pass bf16 from the producer if you
    can — the kernel is HBM-bound and bf16 halves bytes read; do not downcast
    f32 in the caller, that just adds an extra HBM pass).
    """
    assert x.shape == target.shape and x.ndim == 2
    B, N = x.shape
    itemsize = max(jnp.dtype(x.dtype).itemsize, jnp.dtype(target.dtype).itemsize)

    # Lane-pad the class axis to a multiple of 128 so every vector op and the
    # output store is lane-dense. Padded logits -> huge negative (softmax ~ 0),
    # padded targets -> 0, so padded lanes contribute exactly 0 to the loss.
    n_pad = max(128, ((N + 127) // 128) * 128)
    if n_pad != N:
        x = jnp.pad(x, ((0, 0), (0, n_pad - N)),
                    constant_values=float(jnp.finfo(x.dtype).min))
        target = jnp.pad(target, ((0, 0), (0, n_pad - N)), constant_values=0.0)

    b_ceil8 = ((B + 7) // 8) * 8
    if tb is None:
        # Per-row VMEM: 2 inputs x 2 pipeline buffers at input dtype, plus
        # ~4 f32 temporaries (x cast, exp, softmax, diff) inside the body.
        row_bytes = n_pad * (4 * itemsize + 4 * 4)
        tb = max(8, vmem_budget_bytes // row_bytes)
        tb = min(tb, 8192)
    # Guarantee >= min_blocks grid steps so both v7x TensorCores get work.
    if min_blocks > 1:
        tb = min(tb, ((pl.cdiv(B, min_blocks) + 7) // 8) * 8)
    tb = min(int(tb), b_ceil8)
    tb = max(8, (tb // 8) * 8)

    num_blocks = pl.cdiv(B, tb)

    # Explicit scoped-VMEM limit sized for the chosen tile (+ headroom),
    # clamped well under v7x's 64 MiB physical VMEM.
    est_vmem = (2 * 2 * tb * n_pad * itemsize     # double-buffered inputs
                + 4 * tb * n_pad * 4              # f32 temporaries in body
                + 2 * 8 * n_pad * 4)              # double-buffered output tile
    vmem_limit = int(min(max(est_vmem + (4 << 20), 32 << 20), 48 << 20))

    diff_dtype = (jnp.bfloat16
                  if (x.dtype == jnp.bfloat16 and target.dtype == jnp.bfloat16)
                  else jnp.float32)
    kernel = functools.partial(_softmax_l1_partial_kernel,
                               tb=tb, batch=B, n=n_pad, diff_dtype=diff_dtype)

    cost = pl.CostEstimate(
        flops=10 * B * n_pad,
        transcendentals=B * n_pad,
        bytes_accessed=2 * B * n_pad * itemsize + num_blocks * 8 * n_pad * 4,
    )

    partials = pl.pallas_call(
        kernel,
        out_shape=jax.ShapeDtypeStruct((num_blocks * 8, n_pad), jnp.float32),
        grid_spec=pltpu.PrefetchScalarGridSpec(
            num_scalar_prefetch=0,
            grid=(num_blocks,),
            in_specs=[
                pl.BlockSpec((tb, n_pad), lambda i: (i, 0)),
                pl.BlockSpec((tb, n_pad), lambda i: (i, 0)),
            ],
            out_specs=pl.BlockSpec((8, n_pad), lambda i: (i, 0)),
        ),
        compiler_params=pltpu.CompilerParams(
            dimension_semantics=("parallel",),
            vmem_limit_bytes=vmem_limit,
        ),
        cost_estimate=cost,
    )(x, target)

    # Divisor uses the ORIGINAL class count (lane padding contributes 0).
    return jnp.sum(partials) / jnp.float32(B * N)


if __name__ == "__main__":
    key = jax.random.PRNGKey(0)
    kx, kt, kx2, kt2 = jax.random.split(key, 4)

    # Small (batch, num_classes) logits; B deliberately not a multiple of 8
    # so the ragged-last-tile masking path is exercised.
    B, N = 50, 128
    x = jax.random.normal(kx, (B, N), dtype=jnp.float32)
    target = jax.nn.softmax(
        jax.random.normal(kt, (B, N), dtype=jnp.float32), axis=-1
    )
    ref = jnp.mean(jnp.abs(jax.nn.softmax(x, axis=-1) - target))

    # Default path (auto tile, >=2 blocks) and a forced small-tile path with a
    # partial last block.
    loss = jax.block_until_ready(softmax_l1_loss(x, target))
    loss_tiled = jax.block_until_ready(softmax_l1_loss(x, target, tb=16))
    assert jnp.allclose(loss, ref, rtol=1e-4, atol=1e-6), (loss, ref)
    assert jnp.allclose(loss_tiled, ref, rtol=1e-4, atol=1e-6), (loss_tiled, ref)

    # Non-multiple-of-128 class count: exercises the lane-padding path.
    B2, N2 = 40, 100
    x2 = jax.random.normal(kx2, (B2, N2), dtype=jnp.float32)
    t2 = jax.nn.softmax(
        jax.random.normal(kt2, (B2, N2), dtype=jnp.float32), axis=-1
    )
    ref2 = jnp.mean(jnp.abs(jax.nn.softmax(x2, axis=-1) - t2))
    loss2 = jax.block_until_ready(softmax_l1_loss(x2, t2))
    assert jnp.allclose(loss2, ref2, rtol=1e-4, atol=1e-6), (loss2, ref2)

    # bf16 inputs: exercises the packed (bf16) diff / partial-sum path.
    xb = x.astype(jnp.bfloat16)
    tb_ = target.astype(jnp.bfloat16)
    ref_b = jnp.mean(jnp.abs(jax.nn.softmax(xb.astype(jnp.float32), axis=-1)
                             - tb_.astype(jnp.float32)))
    loss_b = jax.block_until_ready(softmax_l1_loss(xb, tb_))
    assert jnp.allclose(loss_b, ref_b, rtol=2e-2, atol=1e-3), (loss_b, ref_b)

    print("KERNEL_OK")
</pallas_src>

<mosaic_0001>
module attributes {stable_mosaic.version = 11 : i64} {
  func.func @_softmax_l1_partial_kernel(%arg0: i32, %arg1: memref<32x128xf32, #tpu.memory_space<vmem>>, %arg2: memref<32x128xf32, #tpu.memory_space<vmem>>, %arg3: memref<8x128xf32, #tpu.memory_space<vmem>>) attributes {dimension_semantics = [#tpu.dimension_semantics<parallel>], iteration_bounds = array<i64: 2>, scalar_prefetch = 0 : i64, scratch_operands = 0 : i64, tpu.core_type = #tpu.core_type<tc>, window_params = [{transform_indices = @transform_0, window_bounds = array<i64: 32, 128>}, {transform_indices = @transform_1, window_bounds = array<i64: 32, 128>}, {transform_indices = @transform_2, window_bounds = array<i64: 8, 128>}]} {
    %c0 = arith.constant 0 : index
    %c0_0 = arith.constant 0 : index
    %0 = vector.load %arg1[%c0, %c0_0] : memref<32x128xf32, #tpu.memory_space<vmem>>, vector<32x128xf32>
    %cst = arith.constant dense<0xFF800000> : vector<32xf32>
    %1 = vector.multi_reduction <maximumf>, %0, %cst [1] : vector<32x128xf32> to vector<32xf32>
    %2 = vector.shape_cast %1 : vector<32xf32> to vector<32x1xf32>
    %3 = vector.broadcast %2 : vector<32x1xf32> to vector<32x128xf32>
    %4 = arith.subf %0, %3 : vector<32x128xf32>
    %5 = math.exp %4 : vector<32x128xf32>
    %cst_1 = arith.constant dense<0.000000e+00> : vector<32xf32>
    %6 = vector.multi_reduction <add>, %5, %cst_1 [1] : vector<32x128xf32> to vector<32xf32>
    %7 = vector.shape_cast %6 : vector<32xf32> to vector<32x1xf32>
    %8 = vector.broadcast %7 : vector<32x1xf32> to vector<32x128xf32>
    %9 = arith.divf %5, %8 : vector<32x128xf32>
    %c0_2 = arith.constant 0 : index
    %c0_3 = arith.constant 0 : index
    %10 = vector.load %arg2[%c0_2, %c0_3] : memref<32x128xf32, #tpu.memory_space<vmem>>, vector<32x128xf32>
    %11 = arith.subf %9, %10 : vector<32x128xf32>
    %12 = math.absf %11 : vector<32x128xf32>
    %c1_i32 = arith.constant 1 : i32
    %13 = arith.cmpi eq, %arg0, %c1_i32 : i32
    %14 = arith.extui %13 : i1 to i32
    %c0_i32 = arith.constant 0 : i32
    %15 = arith.cmpi ne, %14, %c0_i32 : i32
    scf.if %15 {
      %19 = tpu.iota {dimensions = array<i32: 0>} : vector<32x1xi32>
      %c32_i32 = arith.constant 32 : i32
      %20 = arith.muli %arg0, %c32_i32 : i32
      %21 = vector.broadcast %20 : i32 to vector<32x1xi32>
      %22 = arith.addi %19, %21 : vector<32x1xi32>
      %c50_i32 = arith.constant 50 : i32
      %23 = vector.broadcast %c50_i32 : i32 to vector<32x1xi32>
      %24 = arith.cmpi slt, %22, %23 : vector<32x1xi32>
      %cst_6 = arith.constant 0.000000e+00 : f32
      %25 = vector.shape_cast %24 : vector<32x1xi1> to vector<32x1xi1>
      %26 = vector.broadcast %25 : vector<32x1xi1> to vector<32x128xi1>
      %27 = vector.broadcast %cst_6 : f32 to vector<32x128xf32>
      %28 = arith.select %26, %12, %27 : vector<32x128xi1>, vector<32x128xf32>
      %29 = vector.shape_cast %28 : vector<32x128xf32> to vector<4x8x128xf32>
      %cst_7 = arith.constant dense<0.000000e+00> : vector<8x128xf32>
      %30 = vector.multi_reduction <add>, %29, %cst_7 [0] : vector<4x8x128xf32> to vector<8x128xf32>
      %c0_8 = arith.constant 0 : index
      %c0_9 = arith.constant 0 : index
      %31 = vector.load %arg3[%c0_8, %c0_9] : memref<8x128xf32, #tpu.memory_space<vmem>>, vector<8x128xf32>
      tpu.vector_store %arg3[%c0_8, %c0_9], %30 {strides = array<i32>} : memref<8x128xf32, #tpu.memory_space<vmem>>, vector<8x128xf32>,
    } else {
    }
    %c1_i32_4 = arith.constant 1 : i32
    %16 = arith.cmpi ne, %arg0, %c1_i32_4 : i32
    %17 = arith.extui %16 : i1 to i32
    %c0_i32_5 = arith.constant 0 : i32
    %18 = arith.cmpi ne, %17, %c0_i32_5 : i32
    scf.if %18 {
      %19 = vector.shape_cast %12 : vector<32x128xf32> to vector<4x8x128xf32>
      %cst_6 = arith.constant dense<0.000000e+00> : vector<8x128xf32>
      %20 = vector.multi_reduction <add>, %19, %cst_6 [0] : vector<4x8x128xf32> to vector<8x128xf32>
      %c0_7 = arith.constant 0 : index
      %c0_8 = arith.constant 0 : index
      %21 = vector.load %arg3[%c0_7, %c0_8] : memref<8x128xf32, #tpu.memory_space<vmem>>, vector<8x128xf32>
      tpu.vector_store %arg3[%c0_7, %c0_8], %20 {strides = array<i32>} : memref<8x128xf32, #tpu.memory_space<vmem>>, vector<8x128xf32>,
    } else {
    }
    return
  }
  func.func @transform_0(%arg0: i32) -> (i32, i32) {
    %c0_i32 = arith.constant 0 : i32
    %c0_i32_0 = arith.constant 0 : i32
    return %arg0, %c0_i32 : i32, i32
  }
  func.func @transform_1(%arg0: i32) -> (i32, i32) {
    %c0_i32 = arith.constant 0 : i32
    %c0_i32_0 = arith.constant 0 : i32
    return %arg0, %c0_i32 : i32, i32
  }
  func.func @transform_2(%arg0: i32) -> (i32, i32) {
    %c0_i32 = arith.constant 0 : i32
    %c0_i32_0 = arith.constant 0 : i32
    return %arg0, %c0_i32 : i32, i32
  }
}

</mosaic_0001>

<llo_original>
// kernel: tpu_custom_call.1
$region0: #{tpu_custom_call.1}
  #allocation0 [shape = 'u32[]', space=smem, size = 0x4, offset = 0x4, fixed_abs, tag = 'smem constant byte address 0x4 - core index']
  #allocation1 [shape = 'u32[72,128]{1,0:T(1,128)}', space=vmem, size = 0x9000, scoped, tag = 'internal scratch']
  %s0 = inlined_call_operand.hbm [shape: f32[50,128], index: 0, kind: input, shape index: {}]
  %s1 = inlined_call_operand.hbm [shape: f32[50,128], index: 1, kind: input, shape index: {}]
  %s2 = inlined_call_operand.hbm [shape: f32[16,128], index: 2, kind: output, shape index: {}]
  %s3 = sld [smem:[#allocation0]]
  $region57: #{tpu_custom_call.1} parent=0
    _
  %s5 = ssub.s32 1, %s3
  %s6 = scalar_select 0, %s5, %s3
  $region1: #{tpu_custom_call.1} parent=0
    #allocation2 [shape = 'u8[32768]{0}', space=vmem, size = 0x8000, scoped, tag = 'input window, operand 0']
    #allocation3 [shape = 's32[2]{0}', space=sflag, size = 0x8, scoped, tag = 'scoped memory for tpu_custom_call.1']
    #allocation4 [shape = 's32[2]{0}', space=sflag, size = 0x8, scoped, tag = 'scoped memory for tpu_custom_call.1']
    #allocation5 [shape = 'u8[32768]{0}', space=vmem, size = 0x8000, scoped, tag = 'input window, operand 1']
    #allocation6 [shape = 's32[2]{0}', space=sflag, size = 0x8, scoped, tag = 'scoped memory for tpu_custom_call.1']
    #allocation7 [shape = 'u8[8192]{0}', space=vmem, size = 0x2000, scoped, tag = 'output window, operand 0']
    %7 = vsyncpa [#allocation3], 0
    %s8 = scalar_lea.sflag [#allocation3], 1
    %9 = vsyncpa %s8, 0
    %10 = vsyncpa [#allocation6], 0
    %s11 = scalar_lea.sflag [#allocation6], 1
    %12 = vsyncpa %s11, 0
    %13 = vsyncpa [#allocation4], 0
    %s14 = scalar_lea.sflag [#allocation4], 1
    %15 = vsyncpa %s14, 0
    loop: start=0, step=1, limit=4
    $region2: #{tpu_custom_call.1} parent=1 // loop_pre_header
      _
    $region3: #{tpu_custom_call.1} parent=1 // loop_header
      %s17 = sphi 0, %s21
      %p18 = scmp.ge.s32.totalorder %s17, 4
      %s27 = sphi 0, %s29
      %s30 = sphi 0, %s27
      %s31 = sphi 0, %s30
      %s47 = sphi 0, %s31
      %s53 = sphi 0, %s55
      %s56 = sphi 0, %s53
      %s57 = sphi 0, %s56
      %s73 = sphi 0, %s57
      %s79 = sphi 0, %s81
      %s82 = sphi 0, %s79
      %s83 = sphi 0, %s82
      %s99 = sphi 0, %s83
    $region4: #{tpu_custom_call.1} parent=1 // loop_header_branch
      %20 = sbr.rel (%p18) target = $region8
    $region5: #{tpu_custom_call.1} parent=1 // loop_body
      %s22 = ssub.s32 %s17, 1
      %s23 = ssub.s32 %s17, 2
      %s24 = sadd.s32 %s17, 1
      %s25 = ssub.s32 %s17, %s24
      %p26 = scmp.eq.s32.totalorder %s25, 0
      %s28 = sadd.s32 %s27, 1
      %s29 = scalar_select %p26, %s27, %s28
      %p32 = pneg %p26
      %p33 = scmp.eq.s32.totalorder %s17, 1
      %p34 = por %p32, %p33
      %p35 = scmp.ne.s32.totalorder %s27, %s30
      %p36 = scmp.eq.s32.totalorder %s17, 0
      %p37 = por %p35, %p36
      %p38 = scmp.ne.s32.totalorder %s27, %s30
      %p39 = scmp.eq.s32.totalorder %s22, 1
      %p40 = por %p38, %p39
      %p41 = scmp.ne.s32.totalorder %s30, %s31
      %p42 = scmp.eq.s32.totalorder %s22, 0
      %p43 = por %p41, %p42
      %p44 = scmp.ne.s32.totalorder %s30, %s31
      %p45 = scmp.eq.s32.totalorder %s23, 1
      %p46 = por %p44, %p45
      %p48 = scmp.ne.s32.totalorder %s31, %s47
      %p49 = scmp.eq.s32.totalorder %s23, 0
      %p50 = por %p48, %p49
      %s51 = ssub.s32 %s17, %s24
      %p52 = scmp.eq.s32.totalorder %s51, 0
      %s54 = sadd.s32 %s53, 1
      %s55 = scalar_select %p52, %s53, %s54
      %p58 = pneg %p52
      %p59 = scmp.eq.s32.totalorder %s17, 1
      %p60 = por %p58, %p59
      %p61 = scmp.ne.s32.totalorder %s53, %s56
      %p62 = scmp.eq.s32.totalorder %s17, 0
      %p63 = por %p61, %p62
      %p64 = scmp.ne.s32.totalorder %s53, %s56
      %p65 = scmp.eq.s32.totalorder %s22, 1
      %p66 = por %p64, %p65
      %p67 = scmp.ne.s32.totalorder %s56, %s57
      %p68 = scmp.eq.s32.totalorder %s22, 0
      %p69 = por %p67, %p68
      %p70 = scmp.ne.s32.totalorder %s56, %s57
      %p71 = scmp.eq.s32.totalorder %s23, 1
      %p72 = por %p70, %p71
      %p74 = scmp.ne.s32.totalorder %s57, %s73
      %p75 = scmp.eq.s32.totalorder %s23, 0
      %p76 = por %p74, %p75
      %s77 = ssub.s32 %s17, %s24
      %p78 = scmp.eq.s32.totalorder %s77, 0
      %s80 = sadd.s32 %s79, 1
      %s81 = scalar_select %p78, %s79, %s80
      %p84 = pneg %p78
      %p85 = scmp.eq.s32.totalorder %s17, 1
      %p86 = por %p84, %p85
      %p87 = scmp.ne.s32.totalorder %s79, %s82
      %p88 = scmp.eq.s32.totalorder %s17, 0
      %p89 = por %p87, %p88
      %p90 = scmp.ne.s32.totalorder %s79, %s82
      %p91 = scmp.eq.s32.totalorder %s22, 1
      %p92 = por %p90, %p91
      %p93 = scmp.ne.s32.totalorder %s82, %s83
      %p94 = scmp.eq.s32.totalorder %s22, 0
      %p95 = por %p93, %p94
      %p96 = scmp.ne.s32.totalorder %s82, %s83
      %p97 = scmp.eq.s32.totalorder %s23, 1
      %p98 = por %p96, %p97
      %p100 = scmp.ne.s32.totalorder %s83, %s99
      %p101 = scmp.eq.s32.totalorder %s23, 0
      %p102 = por %p100, %p101
      %p103 = scmp.le.s32.totalorder 1, %s17
      %p104 = scmp.lt.s32.totalorder %s17, 3
      %p105 = pnand %p103, %p104
      %p106 = pneg %p105
      // Predicated region
      $region9: #{tpu_custom_call.1} parent=5 // pred_check
        _
      $region10: #{tpu_custom_call.1} parent=5 // pred_check_branch
        %108 = sbr.rel (%p105) target = $region12
      $region11: #{tpu_custom_call.1} parent=5 // pred_region
        %s109 = ssub.s32 %s17, 1
      $region12: #{tpu_custom_call.1} parent=5 // pred_fallthru
        _
      %p110 = scmp.lt.s32.totalorder %s17, 2
      // Predicated region
      $region13: #{tpu_custom_call.1} parent=5 // pred_check
        %p111 = pneg %p110
      $region14: #{tpu_custom_call.1} parent=5 // pred_check_branch
        %113 = sbr.rel (%p111) target = $region16
      $region15: #{tpu_custom_call.1} parent=5 // pred_region
        // Predicated region
        $region17: #{tpu_custom_call.1} parent=15 // pred_check
          %p114 = pneg %p37
        $region18: #{tpu_custom_call.1} parent=15 // pred_check_branch
          %116 = sbr.rel (%p114) target = $region20
        $region19: #{tpu_custom_call.1} parent=15 // pred_region
          %s117 = sand.u32 %s27, 1
          %s118 = scalar_lea.sflag [#allocation3], %s117
          %s119 = sand.u32 %s27, 1
          %s120 = smul.addr %s119, 32
          %s121 = scalar_lea.vmem [#allocation2], %s120
          %s122 = smul.u32 4, %s17
          %s123 = ssub.s32 7, %s122
          %p124 = scmp.lt.s32.totalorder %s123, 4
          %s125 = scalar_select %p124, %s123, 4
          %s126 = smul.u32 8, %s125
          %s127 = ssub.s32 32, %s126
          %s128 = sshll.u32 %s127, 4
          %129 = vsyncadd %s118, %s128
          %p130 = scmp.ne.s32.totalorder 0, %s126
          %s131 = smul.addr %s122, 8
          %s132 = scalar_lea.hbm %s0, %s131
          %s133 = smul.u32 8, %s125
          %s134 = sshll.u32 %s132, 4
          %s135 = int_to_ptr.hbm [resolvable:$true] %s134
          %s136 = sshll.u32 %s121, 4
          %s137 = int_to_ptr.vmem [resolvable:$true] %s136
          %s138 = sshll.u32 %s133, 4
          %142 = dma.hbm_to_vmem [thread:$0]  (%p130), %s135, %s138, %s137, %s118, 128, 128, 8
        $region20: #{tpu_custom_call.1} parent=15 // pred_fallthru
          _
        // Predicated region
        $region21: #{tpu_custom_call.1} parent=15 // pred_check
          %p143 = pneg %p63
        $region22: #{tpu_custom_call.1} parent=15 // pred_check_branch
          %145 = sbr.rel (%p143) target = $region24
        $region23: #{tpu_custom_call.1} parent=15 // pred_region
          %s146 = sand.u32 %s53, 1
          %s147 = scalar_lea.sflag [#allocation6], %s146
          %s148 = sand.u32 %s53, 1
          %s149 = smul.addr %s148, 32
          %s150 = scalar_lea.vmem [#allocation5], %s149
          %s151 = smul.u32 4, %s17
          %s152 = ssub.s32 7, %s151
          %p153 = scmp.lt.s32.totalorder %s152, 4
          %s154 = scalar_select %p153, %s152, 4
          %s155 = smul.u32 8, %s154
          %s156 = ssub.s32 32, %s155
          %s157 = sshll.u32 %s156, 4
          %158 = vsyncadd %s147, %s157
          %p159 = scmp.ne.s32.totalorder 0, %s155
          %s160 = smul.addr %s151, 8
          %s161 = scalar_lea.hbm %s1, %s160
          %s162 = smul.u32 8, %s154
          %s163 = sshll.u32 %s161, 4
          %s164 = int_to_ptr.hbm [resolvable:$true] %s163
          %s165 = sshll.u32 %s150, 4
          %s166 = int_to_ptr.vmem [resolvable:$true] %s165
          %s167 = sshll.u32 %s162, 4
          %171 = dma.hbm_to_vmem [thread:$0]  (%p159), %s164, %s167, %s166, %s147, 128, 128, 8
        $region24: #{tpu_custom_call.1} parent=15 // pred_fallthru
          _
      $region16: #{tpu_custom_call.1} parent=5 // pred_fallthru
        _
      %p172 = scmp.le.s32.totalorder 1, %s17
      %p173 = scmp.lt.s32.totalorder %s17, 3
      %p174 = pnand %p172, %p173
      %p175 = pneg %p174
      // Predicated region
      $region25: #{tpu_custom_call.1} parent=5 // pred_check
        _
      $region26: #{tpu_custom_call.1} parent=5 // pred_check_branch
        %177 = sbr.rel (%p174) target = $region28
      $region27: #{tpu_custom_call.1} parent=5 // pred_region
        %s178 = ssub.s32 %s17, 1
        %s179 = sand.u32 %s30, 1
        %s180 = scalar_lea.sflag [#allocation3], %s179
        %s181 = sand.u32 %s30, 1
        %s182 = smul.addr %s181, 32
        %s183 = scalar_lea.vmem [#allocation2], %s182
        // Predicated region
        $region29: #{tpu_custom_call.1} parent=27 // pred_check
          %p184 = pneg %p43
        $region30: #{tpu_custom_call.1} parent=27 // pred_check_branch
          %186 = sbr.rel (%p184) target = $region32
        $region31: #{tpu_custom_call.1} parent=27 // pred_region
          %188 = dma.done %s180, 512
        $region32: #{tpu_custom_call.1} parent=27 // pred_fallthru
          _
        %s189 = sand.u32 %s56, 1
        %s190 = scalar_lea.sflag [#allocation6], %s189
        %s191 = sand.u32 %s56, 1
        %s192 = smul.addr %s191, 32
        %s193 = scalar_lea.vmem [#allocation5], %s192
        // Predicated region
        $region33: #{tpu_custom_call.1} parent=27 // pred_check
          %p194 = pneg %p69
        $region34: #{tpu_custom_call.1} parent=27 // pred_check_branch
          %196 = sbr.rel (%p194) target = $region36
        $region35: #{tpu_custom_call.1} parent=27 // pred_region
          %198 = dma.done %s190, 512
        $region36: #{tpu_custom_call.1} parent=27 // pred_fallthru
          _
        %s199 = sand.u32 %s30, 1
        %s200 = scalar_lea.sflag [#allocation3], %s199
        %s201 = sand.u32 %s30, 1
        %s202 = smul.addr %s201, 32
        %s203 = scalar_lea.vmem [#allocation2], %s202
        %p204 = pneg %p43
        %p205 = pneg %p40
        %s206 = sand.u32 %s56, 1
        %s207 = scalar_lea.sflag [#allocation6], %s206
        %s208 = sand.u32 %s56, 1
        %s209 = smul.addr %s208, 32
        %s210 = scalar_lea.vmem [#allocation5], %s209
        %p211 = pneg %p69
        %p212 = pneg %p66
        %p213 = pneg %p95
        %p214 = pneg %p92
        %s215 = sand.u32 %s82, 1
        %s216 = scalar_lea.sflag [#allocation4], %s215
        %s217 = sand.u32 %s82, 1
        %s218 = smul.addr %s217, 8
        %s219 = scalar_lea.vmem [#allocation7], %s218
        %s220 = smul.u32 4, %s22
        %s221 = ssub.s32 7, %s220
        %p222 = scmp.lt.s32.totalorder %s221, 4
        %s223 = scalar_select %p222, %s221, 4
        %s224 = smul.u32 8, %s223
        %s225 = smul.u32 4, %s22
        %s226 = ssub.s32 7, %s225
        %p227 = scmp.lt.s32.totalorder %s226, 4
        %s228 = scalar_select %p227, %s226, 4
        %s229 = smul.u32 8, %s228
        %v230 = vld [vmem:[%s183] sm:$0xff]
        %v231 = vld [vmem:[%s183 + $0x8] sm:$0xff]
        %v232 = vld [vmem:[%s183 + $0x10] sm:$0xff]
        %v233 = vld [vmem:[%s183 + $0x18] sm:$0xff]
        %234 = vmax.xlane.f32.xlu0 %v230
        %v235 = vpop.xlane.xlu0 %234
        %236 = vmax.xlane.f32.xlu0 %v231
        %v237 = vpop.xlane.xlu0 %236
        %238 = vmax.xlane.f32.xlu0 %v232
        %v239 = vpop.xlane.xlu0 %238
        %240 = vmax.xlane.f32.xlu0 %v233
        %v241 = vpop.xlane.xlu0 %240
        %v242 = vsub.f32 %v230, %v235
        %v243 = vsub.f32 %v231, %v237
        %v244 = vsub.f32 %v232, %v239
        %v245 = vsub.f32 %v233, %v241
        %v246 = vmul.f32 %v242, 1.442695
        %v247 = vpow.pop %v246
        %v248 = vmul.f32 %v243, 1.442695
        %v249 = vpow.pop %v248
        %v250 = vmul.f32 %v244, 1.442695
        %v251 = vpow.pop %v250
        %v252 = vmul.f32 %v245, 1.442695
        %v253 = vpow.pop %v252
        %254 = vadd.xlane.f32.xlu0 %v247
        %v255 = vpop.xlane.xlu0 %254
        %256 = vadd.xlane.f32.xlu0 %v249
        %v257 = vpop.xlane.xlu0 %256
        %258 = vadd.xlane.f32.xlu0 %v251
        %v259 = vpop.xlane.xlu0 %258
        %260 = vadd.xlane.f32.xlu0 %v253
        %v261 = vpop.xlane.xlu0 %260
        %v262 = vrcp.pop %v255
        %v263 = vmul.f32 %v255, %v262
        %v264 = vsub.f32 1.0, %v263
        %v265 = vmul.f32 %v262, %v264
        %v266 = vadd.f32 %v262, %v265
        %vm267 = vweird.f32 %v255
        %vm268 = vweird.f32 %v262
        %vm269 = vmor %vm267, %vm268
        %v270 = vsel %vm269, %v262, %v266
        %v271 = vand.u32 2147483647, %v255
        %vm272 = vcmp.eq.f32.partialorder %v271, 8.507059e+37
        %v273 = vand.u32 %v255, 2147483648
        %v274 = vor.u32 1.1754944e-38, %v273
        %v275 = vsel %vm272, %v274, %v270
        %v276 = vmul.f32 %v247, %v275
        %v277 = vrcp.pop %v257
        %v278 = vmul.f32 %v257, %v277
        %v279 = vsub.f32 1.0, %v278
        %v280 = vmul.f32 %v277, %v279
        %v281 = vadd.f32 %v277, %v280
        %vm282 = vweird.f32 %v257
        %vm283 = vweird.f32 %v277
        %vm284 = vmor %vm282, %vm283
        %v285 = vsel %vm284, %v277, %v281
        %v286 = vand.u32 2147483647, %v257
        %vm287 = vcmp.eq.f32.partialorder %v286, 8.507059e+37
        %v288 = vand.u32 %v257, 2147483648
        %v289 = vor.u32 1.1754944e-38, %v288
        %v290 = vsel %vm287, %v289, %v285
        %v291 = vmul.f32 %v249, %v290
        %v292 = vrcp.pop %v259
        %v293 = vmul.f32 %v259, %v292
        %v294 = vsub.f32 1.0, %v293
        %v295 = vmul.f32 %v292, %v294
        %v296 = vadd.f32 %v292, %v295
        %vm297 = vweird.f32 %v259
        %vm298 = vweird.f32 %v292
        %vm299 = vmor %vm297, %vm298
        %v300 = vsel %vm299, %v292, %v296
        %v301 = vand.u32 2147483647, %v259
        %vm302 = vcmp.eq.f32.partialorder %v301, 8.507059e+37
        %v303 = vand.u32 %v259, 2147483648
        %v304 = vor.u32 1.1754944e-38, %v303
        %v305 = vsel %vm302, %v304, %v300
        %v306 = vmul.f32 %v251, %v305
        %v307 = vrcp.pop %v261
        %v308 = vmul.f32 %v261, %v307
        %v309 = vsub.f32 1.0, %v308
        %v310 = vmul.f32 %v307, %v309
        %v311 = vadd.f32 %v307, %v310
        %vm312 = vweird.f32 %v261
        %vm313 = vweird.f32 %v307
        %vm314 = vmor %vm312, %vm313
        %v315 = vsel %vm314, %v307, %v311
        %v316 = vand.u32 2147483647, %v261
        %vm317 = vcmp.eq.f32.partialorder %v316, 8.507059e+37
        %v318 = vand.u32 %v261, 2147483648
        %v319 = vor.u32 1.1754944e-38, %v318
        %v320 = vsel %vm317, %v319, %v315
        %v321 = vmul.f32 %v253, %v320
        %v322 = vld [vmem:[%s193] sm:$0xff]
        %v323 = vld [vmem:[%s193 + $0x8] sm:$0xff]
        %v324 = vld [vmem:[%s193 + $0x10] sm:$0xff]
        %v325 = vld [vmem:[%s193 + $0x18] sm:$0xff]
        %v326 = vsub.f32 %v276, %v322
        %v327 = vsub.f32 %v291, %v323
        %v328 = vsub.f32 %v306, %v324
        %v329 = vsub.f32 %v321, %v325
        %v330 = vand.u32 2147483647, %v326
        %v331 = vand.u32 2147483647, %v327
        %v332 = vand.u32 2147483647, %v328
        %v333 = vand.u32 2147483647, %v329
        %p334 = scmp.eq.s32.totalorder %s22, 1
        // Predicated region
        $region37: #{tpu_custom_call.1} parent=27 // pred_check
          %p335 = pneg %p334
        $region38: #{tpu_custom_call.1} parent=27 // pred_check_branch
          %337 = sbr.rel (%p335) target = $region40
        $region39: #{tpu_custom_call.1} parent=27 // pred_region
          %v338 = vlaneseq
          %v339 = vshrl.u32 %v338, 7
          %v340 = vadd.s32 %v339, 8
          %v341 = vadd.s32 %v339, 16
          %v342 = vadd.s32 %v339, 24
          %s343 = smul.u32 %s22, 32
          %v344 = vstv %s343
          %v345 = vadd.s32 %v339, %v344
          %v346 = vadd.s32 %v340, %v344
          %v347 = vadd.s32 %v341, %v344
          %v348 = vadd.s32 %v342, %v344
          %vm349 = vcmp.lt.s32.totalorder %v345, 50
          %vm350 = vcmp.lt.s32.totalorder %v346, 50
          %vm351 = vcmp.lt.s32.totalorder %v347, 50
          %vm352 = vcmp.lt.s32.totalorder %v348, 50
          %v353 = vsel %vm349, 1, 0
          %v354 = vsel %vm350, 1, 0
          %v355 = vsel %vm351, 1, 0
          %v356 = vsel %vm352, 1, 0
          %vm357 = vcmp.eq.s32.totalorder %v353, 1
          %vm358 = vcmp.eq.s32.totalorder %v354, 1
          %vm359 = vcmp.eq.s32.totalorder %v355, 1
          %vm360 = vcmp.eq.s32.totalorder %v356, 1
          %v361 = vsel %vm357, %v330, 0.0
          %v362 = vsel %vm358, %v331, 0.0
          %v363 = vsel %vm359, %v332, 0.0
          %v364 = vsel %vm360, %v333, 0.0
          %v365 = vadd.f32 %v361, %v362
          %v366 = vadd.f32 %v365, %v363
          %v367 = vadd.f32 %v366, %v364
          %368 = vst [vmem:[%s219] sm:$0xff] %v367
        $region40: #{tpu_custom_call.1} parent=27 // pred_fallthru
          _
        %p369 = scmp.ne.s32.totalorder %s22, 1
        // Predicated region
        $region41: #{tpu_custom_call.1} parent=27 // pred_check
          %p370 = pneg %p369
        $region42: #{tpu_custom_call.1} parent=27 // pred_check_branch
          %372 = sbr.rel (%p370) target = $region44
        $region43: #{tpu_custom_call.1} parent=27 // pred_region
          %v373 = vadd.f32 %v330, %v331
          %v374 = vadd.f32 %v373, %v332
          %v375 = vadd.f32 %v374, %v333
          %376 = vst [vmem:[%s219] sm:$0xff] %v375
        $region44: #{tpu_custom_call.1} parent=27 // pred_fallthru
          _
        %s377 = sand.u32 %s82, 1
        %s378 = scalar_lea.sflag [#allocation4], %s377
        %s379 = sand.u32 %s82, 1
        %s380 = smul.addr %s379, 8
        %s381 = scalar_lea.vmem [#allocation7], %s380
        // Predicated region
        $region45: #{tpu_custom_call.1} parent=27 // pred_check
          %p382 = pneg %p92
        $region46: #{tpu_custom_call.1} parent=27 // pred_check_branch
          %384 = sbr.rel (%p382) target = $region48
        $region47: #{tpu_custom_call.1} parent=27 // pred_region
          %386 = vsyncadd %s378, 0
          %s387 = smul.addr %s22, 8
          %s388 = scalar_lea.hbm %s2, %s387
          %s390 = sshll.u32 %s381, 4
          %s391 = int_to_ptr.vmem [resolvable:$true] %s390
          %s392 = sshll.u32 %s388, 4
          %s393 = int_to_ptr.hbm [resolvable:$true] %s392
          %395 = dma.vmem_to_hbm [thread:$0]  %s391, 128, %s393, %s378
        $region48: #{tpu_custom_call.1} parent=27 // pred_fallthru
          _
      $region28: #{tpu_custom_call.1} parent=5 // pred_fallthru
        _
      %p396 = scmp.le.s32.totalorder 2, %s17
      // Predicated region
      $region49: #{tpu_custom_call.1} parent=5 // pred_check
        %p397 = pneg %p396
      $region50: #{tpu_custom_call.1} parent=5 // pred_check_branch
        %399 = sbr.rel (%p397) target = $region52
      $region51: #{tpu_custom_call.1} parent=5 // pred_region
        %s400 = ssub.s32 %s17, 2
        // Predicated region
        $region53: #{tpu_custom_call.1} parent=51 // pred_check
          %p401 = pneg %p98
        $region54: #{tpu_custom_call.1} parent=51 // pred_check_branch
          %403 = sbr.rel (%p401) target = $region56
        $region55: #{tpu_custom_call.1} parent=51 // pred_region
          %s404 = sand.u32 %s83, 1
          %s405 = scalar_lea.sflag [#allocation4], %s404
          %s406 = sand.u32 %s83, 1
          %s407 = smul.addr %s406, 8
          %s408 = scalar_lea.vmem [#allocation7], %s407
          %410 = dma.done %s405, 128
        $region56: #{tpu_custom_call.1} parent=51 // pred_fallthru
          _
      $region52: #{tpu_custom_call.1} parent=5 // pred_fallthru
        _
    $region6: #{tpu_custom_call.1} parent=1 // loop_footer
      %s21 = sadd.s32 1, %s17
    $region7: #{tpu_custom_call.1} parent=1 // loop_footer_branch
      %16 = sbr.rel target = $region3
    $region8: #{tpu_custom_call.1} parent=1 // loop_exit
      _
    %411 = vsyncpa [#allocation3], 1
    %s412 = scalar_lea.sflag [#allocation3], 1
    %413 = vsyncpa %s412, 1
    %414 = vsyncpa [#allocation6], 1
    %s415 = scalar_lea.sflag [#allocation6], 1
    %416 = vsyncpa %s415, 1
    %417 = vsyncpa [#allocation4], 1
    %s418 = scalar_lea.sflag [#allocation4], 1
    %419 = vsyncpa %s418, 1

</llo_original>
